<compile_context>
chip_gen: v7x
topology: tpu7x:2x2x1
jax: 0.10.0
libtpu: 0.0.40
codegen_flags: <defaults>
</compile_context>

<pallas_src>
import functools

import jax
import jax.numpy as jnp
from jax.experimental import pallas as pl
from jax.experimental.pallas import tpu as pltpu


def _round_up(x, m):
    return (x + m - 1) // m * m


def _eres_kernel(x_ref, m_ref, w1_ref, b1_ref, w2_ref, b2_ref, w3_ref, b3_ref,
                 out_ref, *, S, L, L_ext, M):
    # x_ref : (1, 1, C, L_ext) f32  -- flattened padded row-tile, data at [M, M+Pt)
    # m_ref : (1, 1, L)        f32  -- 1.0 at real-image positions, else 0.0
    # w1/w2 : (C, 9C) bf16,  w3 : (C, C) bf16,  b1/b2/b3 : (C, 1) f32
    # out   : (1, 1, C, L)     f32
    C = x_ref.shape[2]
    x_ext = x_ref[0, 0]          # (C, L_ext) f32
    mask = m_ref[0]              # (1, L)     f32

    def conv3x3(inp_ext, w_ref, b_ref):
        # inp_ext: (C, L_ext) f32 with valid data centred at lane offset M.
        # Build the 9-tap im2col patches as shifted slices along the lane-major
        # flat axis (equivalently pltpu.roll), then a single K=9C contraction.
        taps = []
        for dy in range(3):
            for dx in range(3):
                o = (dy - 1) * S + (dx - 1)          # flat offset of this tap
                taps.append(inp_ext[:, M + o:M + o + L])
        patches = jnp.concatenate(taps, axis=0).astype(jnp.bfloat16)   # (9C, L)
        acc = jax.lax.dot_general(                                     # (C, L)
            w_ref[...], patches, (((1,), (0,)), ((), ())),
            preferred_element_type=jnp.float32)
        return acc + b_ref[...]                                        # +(C,1)

    # conv1 + ReLU; the mask zeroes conv-padding / halo-junk positions so t1
    # already carries the zero halo that conv2 needs (replaces the old
    # zero-filled VMEM scratch + partial store + reload).
    t1 = jnp.maximum(conv3x3(x_ext, w1_ref, b1_ref), 0.0) * mask       # (C, L)

    # Re-centre t1 inside a zero margin so conv2 reuses the same tap slices.
    zl = jnp.zeros((C, M), jnp.float32)
    zr = jnp.zeros((C, L_ext - L - M), jnp.float32)
    t1_ext = jnp.concatenate([zl, t1, zr], axis=1)                     # (C, L_ext)

    t2 = jnp.maximum(conv3x3(t1_ext, w2_ref, b2_ref), 0.0)             # (C, L)

    # 1x1 conv (plain matmul) + bias + residual + final ReLU, all lane-dense.
    t3 = jax.lax.dot_general(
        w3_ref[...], t2.astype(jnp.bfloat16), (((1,), (0,)), ((), ())),
        preferred_element_type=jnp.float32) + b3_ref[...]
    out_ref[0, 0] = jnp.maximum(t3 + x_ext[:, M:M + L], 0.0)


def eresidual_block_nchw(x, params, *, tile_rows=8):
    """Public API matching torch: x is NCHW float32, params in torch layouts."""
    w1, b1, w2, b2, w3, b3 = params
    N, C, H, W = x.shape
    TR = tile_rows if H % tile_rows == 0 else H   # rows of output per tile
    T = H // TR                                   # number of row tiles
    S = W + 2                                     # padded row length
    R = TR + 4                                    # tile rows incl. 2-row halo
    Pt = R * S                                    # flat tile length
    L = _round_up(Pt, 128)                        # lane-dense compute length
    M = S + 1                                     # max |tap offset| -> margin
    L_ext = _round_up(L + 2 * M, 128)

    # ---- wrapper-side layout plumbing (pure XLA, no compute hoisted) -------
    # pad rows by 2 (two chained 3x3 convs), cols by 1; build overlapping row
    # tiles; flatten each tile and centre it in a zero lane margin.
    xp = jnp.pad(x, ((0, 0), (0, 0), (2, 2), (1, 1)))               # (N,C,H+4,S)
    xt = jnp.stack([xp[:, :, t * TR:t * TR + R, :] for t in range(T)], axis=1)
    xt = xt.reshape(N, T, C, Pt)
    x_ext = jnp.pad(xt, ((0, 0), (0, 0), (0, 0), (M, L_ext - Pt - M)))

    # per-tile validity mask of real-image positions (zeros elsewhere)
    mf = jnp.pad(jnp.ones((H, W), jnp.float32), ((2, 2), (1, 1)))   # (H+4, S)
    mt = jnp.stack([mf[t * TR:t * TR + R, :] for t in range(T)], axis=0)
    mt = mt.reshape(T, 1, Pt)
    mt = jnp.pad(mt, ((0, 0), (0, 0), (0, L - Pt)))                 # (T, 1, L)

    # weights: fold the 3x3 taps into the contraction dim, cast to bf16
    w1k = w1.transpose(0, 2, 3, 1).reshape(C, 9 * C).astype(jnp.bfloat16)
    w2k = w2.transpose(0, 2, 3, 1).reshape(C, 9 * C).astype(jnp.bfloat16)
    w3k = w3.reshape(C, C).astype(jnp.bfloat16)
    b1k = b1.reshape(C, 1).astype(jnp.float32)
    b2k = b2.reshape(C, 1).astype(jnp.float32)
    b3k = b3.reshape(C, 1).astype(jnp.float32)

    kernel = functools.partial(_eres_kernel, S=S, L=L, L_ext=L_ext, M=M)
    rep = lambda shape: pl.BlockSpec(shape, lambda n, t: (0,) * len(shape))

    out_tiles = pl.pallas_call(
        kernel,
        out_shape=jax.ShapeDtypeStruct((N, T, C, L), jnp.float32),
        grid_spec=pltpu.PrefetchScalarGridSpec(
            num_scalar_prefetch=0,
            grid=(N, T),
            in_specs=[
                pl.BlockSpec((1, 1, C, L_ext), lambda n, t: (n, t, 0, 0)),
                pl.BlockSpec((1, 1, L), lambda n, t: (t, 0, 0)),
                rep((C, 9 * C)),   # w1
                rep((C, 1)),       # b1
                rep((C, 9 * C)),   # w2
                rep((C, 1)),       # b2
                rep((C, C)),       # w3 (1x1 conv as matmul)
                rep((C, 1)),       # b3
            ],
            out_specs=pl.BlockSpec((1, 1, C, L), lambda n, t: (n, t, 0, 0)),
        ),
        compiler_params=pltpu.CompilerParams(
            dimension_semantics=("parallel", "parallel"),
            vmem_limit_bytes=32 * 1024 * 1024),
    )(x_ext, mt, w1k, b1k, w2k, b2k, w3k, b3k)

    # drop lane-padding tail, halo rows and column padding; back to NCHW.
    out = out_tiles[..., :Pt].reshape(N, T, C, R, S)
    out = out[:, :, :, 2:TR + 2, 1:W + 1]                 # (N, T, C, TR, W)
    return out.transpose(0, 2, 1, 3, 4).reshape(N, C, H, W)


def _reference_nchw(x, params):
    """Pure-JAX mirror of the PyTorch module (f32) for validation."""
    w1, b1, w2, b2, w3, b3 = params
    dn = ("NCHW", "OIHW", "NCHW")
    t = jax.lax.conv_general_dilated(x, w1, (1, 1), "SAME",
                                     dimension_numbers=dn) + b1.reshape(1, -1, 1, 1)
    t = jnp.maximum(t, 0.0)
    t = jax.lax.conv_general_dilated(t, w2, (1, 1), "SAME",
                                     dimension_numbers=dn) + b2.reshape(1, -1, 1, 1)
    t = jnp.maximum(t, 0.0)
    t = jax.lax.conv_general_dilated(t, w3, (1, 1), "VALID",
                                     dimension_numbers=dn) + b3.reshape(1, -1, 1, 1)
    return jnp.maximum(t + x, 0.0)


def make_params(key, channels):
    """Deterministic synthetic parameters in torch layouts (OIHW / (C,))."""
    c = channels
    ks = jax.random.split(key, 6)
    w1 = 0.1 * jax.random.normal(ks[0], (c, c, 3, 3), jnp.float32)
    b1 = 0.1 * jax.random.normal(ks[1], (c,), jnp.float32)
    w2 = 0.1 * jax.random.normal(ks[2], (c, c, 3, 3), jnp.float32)
    b2 = 0.1 * jax.random.normal(ks[3], (c,), jnp.float32)
    w3 = 0.1 * jax.random.normal(ks[4], (c, c, 1, 1), jnp.float32)
    b3 = 0.1 * jax.random.normal(ks[5], (c,), jnp.float32)
    return (w1, b1, w2, b2, w3, b3)


if __name__ == "__main__":
    key = jax.random.PRNGKey(0)
    k_x, k_p = jax.random.split(key)

    N, C, H, W = 2, 4, 16, 16          # in_channels == out_channels (residual)
    x = jax.random.normal(k_x, (N, C, H, W), jnp.float32)
    params = make_params(k_p, C)

    out = eresidual_block_nchw(x, params)
    out = jax.block_until_ready(out)

    # Validate against the f32 reference.  Matmul inputs are bf16 (f32
    # accumulation + f32 epilogue), so the tolerance is loosened vs 1e-4.
    ref = _reference_nchw(x, params)
    assert out.shape == x.shape
    assert jnp.allclose(out, ref, atol=3e-2, rtol=3e-2), (
        "mismatch vs reference, max abs diff = "
        + str(float(jnp.max(jnp.abs(out - ref)))))

    print("KERNEL_OK")
</pallas_src>

<mosaic_0001>
module attributes {stable_mosaic.version = 11 : i64} {
  func.func @_eres_kernel(%arg0: i32, %arg1: i32, %arg2: memref<1x1x4x384xf32, #tpu.memory_space<vmem>>, %arg3: memref<1x1x256xf32, #tpu.memory_space<vmem>>, %arg4: memref<4x36xbf16, #tpu.memory_space<vmem>>, %arg5: memref<4x1xf32, #tpu.memory_space<vmem>>, %arg6: memref<4x36xbf16, #tpu.memory_space<vmem>>, %arg7: memref<4x1xf32, #tpu.memory_space<vmem>>, %arg8: memref<4x4xbf16, #tpu.memory_space<vmem>>, %arg9: memref<4x1xf32, #tpu.memory_space<vmem>>, %arg10: memref<1x1x4x256xf32, #tpu.memory_space<vmem>>) attributes {dimension_semantics = [#tpu.dimension_semantics<parallel>, #tpu.dimension_semantics<parallel>], iteration_bounds = array<i64: 2, 2>, scalar_prefetch = 0 : i64, scratch_operands = 0 : i64, tpu.core_type = #tpu.core_type<tc>, window_params = [{transform_indices = @transform_0, window_bounds = array<i64: 1, 1, 4, 384>}, {transform_indices = @transform_1, window_bounds = array<i64: 1, 1, 256>}, {pipeline_mode = #tpu.pipeline_mode<synchronous>, transform_indices = @transform_2, window_bounds = array<i64: 4, 36>}, {pipeline_mode = #tpu.pipeline_mode<synchronous>, transform_indices = @transform_3, window_bounds = array<i64: 4, 1>}, {pipeline_mode = #tpu.pipeline_mode<synchronous>, transform_indices = @transform_4, window_bounds = array<i64: 4, 36>}, {pipeline_mode = #tpu.pipeline_mode<synchronous>, transform_indices = @transform_5, window_bounds = array<i64: 4, 1>}, {pipeline_mode = #tpu.pipeline_mode<synchronous>, transform_indices = @transform_6, window_bounds = array<i64: 4, 4>}, {pipeline_mode = #tpu.pipeline_mode<synchronous>, transform_indices = @transform_7, window_bounds = array<i64: 4, 1>}, {transform_indices = @transform_8, window_bounds = array<i64: 1, 1, 4, 256>}]} {
    %c0 = arith.constant 0 : index
    %c0_0 = arith.constant 0 : index
    %c0_1 = arith.constant 0 : index
    %c0_2 = arith.constant 0 : index
    %0 = vector.load %arg2[%c0, %c0_0, %c0_1, %c0_2] : memref<1x1x4x384xf32, #tpu.memory_space<vmem>>, vector<1x1x4x384xf32>
    %1 = vector.shape_cast %0 : vector<1x1x4x384xf32> to vector<4x384xf32>
    %c0_3 = arith.constant 0 : index
    %c0_4 = arith.constant 0 : index
    %c0_5 = arith.constant 0 : index
    %2 = vector.load %arg3[%c0_3, %c0_4, %c0_5] : memref<1x1x256xf32, #tpu.memory_space<vmem>>, vector<1x1x256xf32>
    %3 = vector.shape_cast %2 : vector<1x1x256xf32> to vector<1x256xf32>
    %4 = vector.extract_strided_slice %1 {offsets = [0, 0], sizes = [4, 256], strides = [1, 1]} : vector<4x384xf32> to vector<4x256xf32>
    %5 = vector.extract_strided_slice %1 {offsets = [0, 1], sizes = [4, 256], strides = [1, 1]} : vector<4x384xf32> to vector<4x256xf32>
    %6 = vector.extract_strided_slice %1 {offsets = [0, 2], sizes = [4, 256], strides = [1, 1]} : vector<4x384xf32> to vector<4x256xf32>
    %7 = vector.extract_strided_slice %1 {offsets = [0, 18], sizes = [4, 256], strides = [1, 1]} : vector<4x384xf32> to vector<4x256xf32>
    %8 = vector.extract_strided_slice %1 {offsets = [0, 19], sizes = [4, 256], strides = [1, 1]} : vector<4x384xf32> to vector<4x256xf32>
    %9 = vector.extract_strided_slice %1 {offsets = [0, 20], sizes = [4, 256], strides = [1, 1]} : vector<4x384xf32> to vector<4x256xf32>
    %10 = vector.extract_strided_slice %1 {offsets = [0, 36], sizes = [4, 256], strides = [1, 1]} : vector<4x384xf32> to vector<4x256xf32>
    %11 = vector.extract_strided_slice %1 {offsets = [0, 37], sizes = [4, 256], strides = [1, 1]} : vector<4x384xf32> to vector<4x256xf32>
    %12 = vector.extract_strided_slice %1 {offsets = [0, 38], sizes = [4, 256], strides = [1, 1]} : vector<4x384xf32> to vector<4x256xf32>
    %13 = tpu.concatenate %4, %5, %6, %7, %8, %9, %10, %11, %12 in 0 : vector<4x256xf32>, vector<4x256xf32>, vector<4x256xf32>, vector<4x256xf32>, vector<4x256xf32>, vector<4x256xf32>, vector<4x256xf32>, vector<4x256xf32>, vector<4x256xf32> -> vector<36x256xf32>
    %14 = arith.truncf %13 : vector<36x256xf32> to vector<36x256xbf16>
    %c0_6 = arith.constant 0 : index
    %c0_7 = arith.constant 0 : index
    %15 = vector.load %arg4[%c0_6, %c0_7] : memref<4x36xbf16, #tpu.memory_space<vmem>>, vector<4x36xbf16>
    %cst = arith.constant dense<0.000000e+00> : vector<4x256xf32>
    %16 = tpu.matmul %15, %14, %cst {dimension_numbers = #tpu.dot_dimension_numbers<[1], [0], [0], [1], [0, 0, 1, 1], [], []>} : vector<4x36xbf16>, vector<36x256xbf16>, vector<4x256xf32> -> vector<4x256xf32>
    %c0_8 = arith.constant 0 : index
    %c0_9 = arith.constant 0 : index
    %17 = vector.load %arg5[%c0_8, %c0_9] : memref<4x1xf32, #tpu.memory_space<vmem>>, vector<4x1xf32>
    %18 = vector.broadcast %17 : vector<4x1xf32> to vector<4x256xf32>
    %19 = arith.addf %16, %18 : vector<4x256xf32>
    %cst_10 = arith.constant 0.000000e+00 : f32
    %20 = vector.broadcast %cst_10 : f32 to vector<4x256xf32>
    %21 = arith.maximumf %19, %20 : vector<4x256xf32>
    %22 = vector.broadcast %3 : vector<1x256xf32> to vector<4x256xf32>
    %23 = arith.mulf %21, %22 : vector<4x256xf32>
    %cst_11 = arith.constant 0.000000e+00 : f32
    %24 = vector.broadcast %cst_11 : f32 to vector<4x19xf32>
    %cst_12 = arith.constant 0.000000e+00 : f32
    %25 = vector.broadcast %cst_12 : f32 to vector<4x109xf32>
    %26 = tpu.concatenate %24, %23, %25 in 1 : vector<4x19xf32>, vector<4x256xf32>, vector<4x109xf32> -> vector<4x384xf32>
    %27 = vector.extract_strided_slice %26 {offsets = [0, 0], sizes = [4, 256], strides = [1, 1]} : vector<4x384xf32> to vector<4x256xf32>
    %28 = vector.extract_strided_slice %26 {offsets = [0, 1], sizes = [4, 256], strides = [1, 1]} : vector<4x384xf32> to vector<4x256xf32>
    %29 = vector.extract_strided_slice %26 {offsets = [0, 2], sizes = [4, 256], strides = [1, 1]} : vector<4x384xf32> to vector<4x256xf32>
    %30 = vector.extract_strided_slice %26 {offsets = [0, 18], sizes = [4, 256], strides = [1, 1]} : vector<4x384xf32> to vector<4x256xf32>
    %31 = vector.extract_strided_slice %26 {offsets = [0, 19], sizes = [4, 256], strides = [1, 1]} : vector<4x384xf32> to vector<4x256xf32>
    %32 = vector.extract_strided_slice %26 {offsets = [0, 20], sizes = [4, 256], strides = [1, 1]} : vector<4x384xf32> to vector<4x256xf32>
    %33 = vector.extract_strided_slice %26 {offsets = [0, 36], sizes = [4, 256], strides = [1, 1]} : vector<4x384xf32> to vector<4x256xf32>
    %34 = vector.extract_strided_slice %26 {offsets = [0, 37], sizes = [4, 256], strides = [1, 1]} : vector<4x384xf32> to vector<4x256xf32>
    %35 = vector.extract_strided_slice %26 {offsets = [0, 38], sizes = [4, 256], strides = [1, 1]} : vector<4x384xf32> to vector<4x256xf32>
    %36 = tpu.concatenate %27, %28, %29, %30, %31, %32, %33, %34, %35 in 0 : vector<4x256xf32>, vector<4x256xf32>, vector<4x256xf32>, vector<4x256xf32>, vector<4x256xf32>, vector<4x256xf32>, vector<4x256xf32>, vector<4x256xf32>, vector<4x256xf32> -> vector<36x256xf32>
    %37 = arith.truncf %36 : vector<36x256xf32> to vector<36x256xbf16>
    %c0_13 = arith.constant 0 : index
    %c0_14 = arith.constant 0 : index
    %38 = vector.load %arg6[%c0_13, %c0_14] : memref<4x36xbf16, #tpu.memory_space<vmem>>, vector<4x36xbf16>
    %cst_15 = arith.constant dense<0.000000e+00> : vector<4x256xf32>
    %39 = tpu.matmul %38, %37, %cst_15 {dimension_numbers = #tpu.dot_dimension_numbers<[1], [0], [0], [1], [0, 0, 1, 1], [], []>} : vector<4x36xbf16>, vector<36x256xbf16>, vector<4x256xf32> -> vector<4x256xf32>
    %c0_16 = arith.constant 0 : index
    %c0_17 = arith.constant 0 : index
    %40 = vector.load %arg7[%c0_16, %c0_17] : memref<4x1xf32, #tpu.memory_space<vmem>>, vector<4x1xf32>
    %41 = vector.broadcast %40 : vector<4x1xf32> to vector<4x256xf32>
    %42 = arith.addf %39, %41 : vector<4x256xf32>
    %cst_18 = arith.constant 0.000000e+00 : f32
    %43 = vector.broadcast %cst_18 : f32 to vector<4x256xf32>
    %44 = arith.maximumf %42, %43 : vector<4x256xf32>
    %c0_19 = arith.constant 0 : index
    %c0_20 = arith.constant 0 : index
    %45 = vector.load %arg8[%c0_19, %c0_20] : memref<4x4xbf16, #tpu.memory_space<vmem>>, vector<4x4xbf16>
    %46 = arith.truncf %44 : vector<4x256xf32> to vector<4x256xbf16>
    %cst_21 = arith.constant dense<0.000000e+00> : vector<4x256xf32>
    %47 = tpu.matmul %45, %46, %cst_21 {dimension_numbers = #tpu.dot_dimension_numbers<[1], [0], [0], [1], [0, 0, 1, 1], [], []>} : vector<4x4xbf16>, vector<4x256xbf16>, vector<4x256xf32> -> vector<4x256xf32>
    %c0_22 = arith.constant 0 : index
    %c0_23 = arith.constant 0 : index
    %48 = vector.load %arg9[%c0_22, %c0_23] : memref<4x1xf32, #tpu.memory_space<vmem>>, vector<4x1xf32>
    %49 = vector.broadcast %48 : vector<4x1xf32> to vector<4x256xf32>
    %50 = arith.addf %47, %49 : vector<4x256xf32>
    %51 = vector.extract_strided_slice %1 {offsets = [0, 19], sizes = [4, 256], strides = [1, 1]} : vector<4x384xf32> to vector<4x256xf32>
    %52 = arith.addf %50, %51 : vector<4x256xf32>
    %cst_24 = arith.constant 0.000000e+00 : f32
    %53 = vector.broadcast %cst_24 : f32 to vector<4x256xf32>
    %54 = arith.maximumf %52, %53 : vector<4x256xf32>
    %c0_25 = arith.constant 0 : index
    %c0_26 = arith.constant 0 : index
    %c0_27 = arith.constant 0 : index
    %c0_28 = arith.constant 0 : index
    %55 = vector.load %arg10[%c0_25, %c0_26, %c0_27, %c0_28] : memref<1x1x4x256xf32, #tpu.memory_space<vmem>>, vector<1x1x4x256xf32>
    %56 = vector.shape_cast %55 : vector<1x1x4x256xf32> to vector<4x256xf32>
    %57 = vector.shape_cast %54 : vector<4x256xf32> to vector<1x1x4x256xf32>
    tpu.vector_store %arg10[%c0_25, %c0_26, %c0_27, %c0_28], %57 {strides = array<i32>} : memref<1x1x4x256xf32, #tpu.memory_space<vmem>>, vector<1x1x4x256xf32>,
    return
  }
  func.func @transform_0(%arg0: i32, %arg1: i32) -> (i32, i32, i32, i32) {
    %c0_i32 = arith.constant 0 : i32
    %c0_i32_0 = arith.constant 0 : i32
    %c0_i32_1 = arith.constant 0 : i32
    return %arg0, %arg1, %c0_i32, %c0_i32_0 : i32, i32, i32, i32
  }
  func.func @transform_1(%arg0: i32, %arg1: i32) -> (i32, i32, i32) {
    %c0_i32 = arith.constant 0 : i32
    %c0_i32_0 = arith.constant 0 : i32
    %c0_i32_1 = arith.constant 0 : i32
    return %arg1, %c0_i32, %c0_i32_0 : i32, i32, i32
  }
  func.func @transform_2(%arg0: i32, %arg1: i32) -> (i32, i32) {
    %c0_i32 = arith.constant 0 : i32
    %c0_i32_0 = arith.constant 0 : i32
    %c0_i32_1 = arith.constant 0 : i32
    return %c0_i32, %c0_i32_0 : i32, i32
  }
  func.func @transform_3(%arg0: i32, %arg1: i32) -> (i32, i32) {
    %c0_i32 = arith.constant 0 : i32
    %c0_i32_0 = arith.constant 0 : i32
    %c0_i32_1 = arith.constant 0 : i32
    return %c0_i32, %c0_i32_0 : i32, i32
  }
  func.func @transform_4(%arg0: i32, %arg1: i32) -> (i32, i32) {
    %c0_i32 = arith.constant 0 : i32
    %c0_i32_0 = arith.constant 0 : i32
    %c0_i32_1 = arith.constant 0 : i32
    return %c0_i32, %c0_i32_0 : i32, i32
  }
  func.func @transform_5(%arg0: i32, %arg1: i32) -> (i32, i32) {
    %c0_i32 = arith.constant 0 : i32
    %c0_i32_0 = arith.constant 0 : i32
    %c0_i32_1 = arith.constant 0 : i32
    return %c0_i32, %c0_i32_0 : i32, i32
  }
  func.func @transform_6(%arg0: i32, %arg1: i32) -> (i32, i32) {
    %c0_i32 = arith.constant 0 : i32
    %c0_i32_0 = arith.constant 0 : i32
    %c0_i32_1 = arith.constant 0 : i32
    return %c0_i32, %c0_i32_0 : i32, i32
  }
  func.func @transform_7(%arg0: i32, %arg1: i32) -> (i32, i32) {
    %c0_i32 = arith.constant 0 : i32
    %c0_i32_0 = arith.constant 0 : i32
    %c0_i32_1 = arith.constant 0 : i32
    return %c0_i32, %c0_i32_0 : i32, i32
  }
  func.func @transform_8(%arg0: i32, %arg1: i32) -> (i32, i32, i32, i32) {
    %c0_i32 = arith.constant 0 : i32
    %c0_i32_0 = arith.constant 0 : i32
    %c0_i32_1 = arith.constant 0 : i32
    return %arg0, %arg1, %c0_i32, %c0_i32_0 : i32, i32, i32, i32
  }
}

</mosaic_0001>

<llo_original>
// kernel: tpu_custom_call.1
$region0: #{tpu_custom_call.1}
  #allocation0 [shape = 'u32[]', space=smem, size = 0x4, offset = 0x4, fixed_abs, tag = 'smem constant byte address 0x4 - core index']
  #allocation1 [shape = 'u32[144,128]{1,0:T(1,128)}', space=vmem, size = 0x12000, scoped, tag = 'internal scratch']
  %s0 = inlined_call_operand.hbm [shape: f32[2,2,4,384], index: 0, kind: input, shape index: {}]
  %s1 = inlined_call_operand.vmem [shape: f32[2,1,256], index: 1, kind: input, shape index: {}]
  %s2 = inlined_call_operand.vmem [shape: bf16[4,36], index: 2, kind: input, shape index: {}]
  %s3 = inlined_call_operand.vmem [shape: f32[4,1], index: 3, kind: input, shape index: {}]
  %s4 = inlined_call_operand.vmem [shape: bf16[4,36], index: 4, kind: input, shape index: {}]
  %s5 = inlined_call_operand.vmem [shape: f32[4,1], index: 5, kind: input, shape index: {}]
  %s6 = inlined_call_operand.vmem [shape: bf16[4,4], index: 6, kind: input, shape index: {}]
  %s7 = inlined_call_operand.vmem [shape: f32[4,1], index: 7, kind: input, shape index: {}]
  %s8 = inlined_call_operand.hbm [shape: f32[2,2,4,256], index: 8, kind: output, shape index: {}]
  %s9 = sld [smem:[#allocation0]]
  $region69: #{tpu_custom_call.1} parent=0
    _
  %s11 = ssub.s32 1, %s9
  %s12 = scalar_select 0, %s11, %s9
  $region1: #{tpu_custom_call.1} parent=0
    #allocation2 [shape = 'u8[12288]{0}', space=vmem, size = 0x3000, scoped, tag = 'input window, operand 0']
    #allocation3 [shape = 's32[2]{0}', space=sflag, size = 0x8, scoped, tag = 'scoped memory for tpu_custom_call.1']
    #allocation4 [shape = 's32[2]{0}', space=sflag, size = 0x8, scoped, tag = 'scoped memory for tpu_custom_call.1']
    #allocation5 [shape = 'u8[8192]{0}', space=vmem, size = 0x2000, scoped, tag = 'output window, operand 0']
    %13 = vsyncpa [#allocation3], 0
    %s14 = scalar_lea.sflag [#allocation3], 1
    %15 = vsyncpa %s14, 0
    %16 = vsyncpa [#allocation4], 0
    %s17 = scalar_lea.sflag [#allocation4], 1
    %18 = vsyncpa %s17, 0
    loop: start=0, step=1, limit=6
    $region2: #{tpu_custom_call.1} parent=1 // loop_pre_header
      _
    $region3: #{tpu_custom_call.1} parent=1 // loop_header
      %s20 = sphi 0, %s24
      %p21 = scmp.ge.s32.totalorder %s20, 6
      %s27 = sphi 0, %s39
      %s28 = sphi 0, %s35
      %s29 = sphi 0, %s27
      %s30 = sphi 0, %s28
      %s31 = sphi 0, %s29
      %s32 = sphi 0, %s30
      %s44 = sphi 0, %s46
      %s47 = sphi 0, %s44
      %s48 = sphi 0, %s47
      %s64 = sphi 0, %s48
      %s70 = sphi 0, %s72
      %s73 = sphi 0, %s70
      %s74 = sphi 0, %s73
      %s90 = sphi 0, %s74
      %s94 = sphi 0, %s94
      %s96 = sphi 0, %s94
      %s97 = sphi 0, %s96
      %s111 = sphi 0, %s97
      %s115 = sphi 0, %s115
      %s117 = sphi 0, %s115
      %s118 = sphi 0, %s117
      %s132 = sphi 0, %s118
      %s136 = sphi 0, %s136
      %s138 = sphi 0, %s136
      %s139 = sphi 0, %s138
      %s153 = sphi 0, %s139
      %s157 = sphi 0, %s157
      %s159 = sphi 0, %s157
      %s160 = sphi 0, %s159
      %s174 = sphi 0, %s160
      %s178 = sphi 0, %s178
      %s180 = sphi 0, %s178
      %s181 = sphi 0, %s180
      %s195 = sphi 0, %s181
      %s199 = sphi 0, %s199
      %s201 = sphi 0, %s199
      %s202 = sphi 0, %s201
      %s216 = sphi 0, %s202
      %s224 = sphi 0, %s226
      %s227 = sphi 0, %s224
      %s228 = sphi 0, %s227
      %s244 = sphi 0, %s228
    $region4: #{tpu_custom_call.1} parent=1 // loop_header_branch
      %23 = sbr.rel (%p21) target = $region8
    $region5: #{tpu_custom_call.1} parent=1 // loop_body
      %s25 = ssub.s32 %s20, 1
      %s26 = ssub.s32 %s20, 2
      %s33 = sadd.s32 1, %s28
      %p34 = scmp.ge.s32.totalorder %s33, 2
      %s35 = scalar_select %p34, 0, %s33
      %s36 = sadd.s32 1, %s27
      %s37 = scalar_select %p34, %s36, %s27
      %p38 = scmp.ge.s32.totalorder %s37, 2
      %s39 = scalar_select %p38, 0, %s37
      %s40 = ssub.s32 %s27, %s39
      %s41 = ssub.s32 %s28, %s35
      %s42 = sor.u32 %s40, %s41
      %p43 = scmp.eq.s32.totalorder %s42, 0
      %s45 = sadd.s32 %s44, 1
      %s46 = scalar_select %p43, %s44, %s45
      %p49 = pneg %p43
      %p50 = scmp.eq.s32.totalorder %s20, 3
      %p51 = por %p49, %p50
      %p52 = scmp.ne.s32.totalorder %s44, %s47
      %p53 = scmp.eq.s32.totalorder %s20, 0
      %p54 = por %p52, %p53
      %p55 = scmp.ne.s32.totalorder %s44, %s47
      %p56 = scmp.eq.s32.totalorder %s25, 3
      %p57 = por %p55, %p56
      %p58 = scmp.ne.s32.totalorder %s47, %s48
      %p59 = scmp.eq.s32.totalorder %s25, 0
      %p60 = por %p58, %p59
      %p61 = scmp.ne.s32.totalorder %s47, %s48
      %p62 = scmp.eq.s32.totalorder %s26, 3
      %p63 = por %p61, %p62
      %p65 = scmp.ne.s32.totalorder %s48, %s64
      %p66 = scmp.eq.s32.totalorder %s26, 0
      %p67 = por %p65, %p66
      %s68 = ssub.s32 %s28, %s35
      %p69 = scmp.eq.s32.totalorder %s68, 0
      %s71 = sadd.s32 %s70, 1
      %s72 = scalar_select %p69, %s70, %s71
      %p75 = pneg %p69
      %p76 = scmp.eq.s32.totalorder %s20, 3
      %p77 = por %p75, %p76
      %p78 = scmp.ne.s32.totalorder %s70, %s73
      %p79 = scmp.eq.s32.totalorder %s20, 0
      %p80 = por %p78, %p79
      %p81 = scmp.ne.s32.totalorder %s70, %s73
      %p82 = scmp.eq.s32.totalorder %s25, 3
      %p83 = por %p81, %p82
      %p84 = scmp.ne.s32.totalorder %s73, %s74
      %p85 = scmp.eq.s32.totalorder %s25, 0
      %p86 = por %p84, %p85
      %p87 = scmp.ne.s32.totalorder %s73, %s74
      %p88 = scmp.eq.s32.totalorder %s26, 3
      %p89 = por %p87, %p88
      %p91 = scmp.ne.s32.totalorder %s74, %s90
      %p92 = scmp.eq.s32.totalorder %s26, 0
      %p93 = por %p91, %p92
      %s95 = sadd.s32 %s94, 1
      %p98 = scmp.eq.s32.totalorder %s20, 3
      %p99 = scmp.ne.s32.totalorder %s94, %s96
      %p100 = scmp.eq.s32.totalorder %s20, 0
      %p101 = por %p99, %p100
      %p102 = scmp.ne.s32.totalorder %s94, %s96
      %p103 = scmp.eq.s32.totalorder %s25, 3
      %p104 = por %p102, %p103
      %p105 = scmp.ne.s32.totalorder %s96, %s97
      %p106 = scmp.eq.s32.totalorder %s25, 0
      %p107 = por %p105, %p106
      %p108 = scmp.ne.s32.totalorder %s96, %s97
      %p109 = scmp.eq.s32.totalorder %s26, 3
      %p110 = por %p108, %p109
      %p112 = scmp.ne.s32.totalorder %s97, %s111
      %p113 = scmp.eq.s32.totalorder %s26, 0
      %p114 = por %p112, %p113
      %s116 = sadd.s32 %s115, 1
      %p119 = scmp.eq.s32.totalorder %s20, 3
      %p120 = scmp.ne.s32.totalorder %s115, %s117
      %p121 = scmp.eq.s32.totalorder %s20, 0
      %p122 = por %p120, %p121
      %p123 = scmp.ne.s32.totalorder %s115, %s117
      %p124 = scmp.eq.s32.totalorder %s25, 3
      %p125 = por %p123, %p124
      %p126 = scmp.ne.s32.totalorder %s117, %s118
      %p127 = scmp.eq.s32.totalorder %s25, 0
      %p128 = por %p126, %p127
      %p129 = scmp.ne.s32.totalorder %s117, %s118
      %p130 = scmp.eq.s32.totalorder %s26, 3
      %p131 = por %p129, %p130
      %p133 = scmp.ne.s32.totalorder %s118, %s132
      %p134 = scmp.eq.s32.totalorder %s26, 0
      %p135 = por %p133, %p134
      %s137 = sadd.s32 %s136, 1
      %p140 = scmp.eq.s32.totalorder %s20, 3
      %p141 = scmp.ne.s32.totalorder %s136, %s138
      %p142 = scmp.eq.s32.totalorder %s20, 0
      %p143 = por %p141, %p142
      %p144 = scmp.ne.s32.totalorder %s136, %s138
      %p145 = scmp.eq.s32.totalorder %s25, 3
      %p146 = por %p144, %p145
      %p147 = scmp.ne.s32.totalorder %s138, %s139
      %p148 = scmp.eq.s32.totalorder %s25, 0
      %p149 = por %p147, %p148
      %p150 = scmp.ne.s32.totalorder %s138, %s139
      %p151 = scmp.eq.s32.totalorder %s26, 3
      %p152 = por %p150, %p151
      %p154 = scmp.ne.s32.totalorder %s139, %s153
      %p155 = scmp.eq.s32.totalorder %s26, 0
      %p156 = por %p154, %p155
      %s158 = sadd.s32 %s157, 1
      %p161 = scmp.eq.s32.totalorder %s20, 3
      %p162 = scmp.ne.s32.totalorder %s157, %s159
      %p163 = scmp.eq.s32.totalorder %s20, 0
      %p164 = por %p162, %p163
      %p165 = scmp.ne.s32.totalorder %s157, %s159
      %p166 = scmp.eq.s32.totalorder %s25, 3
      %p167 = por %p165, %p166
      %p168 = scmp.ne.s32.totalorder %s159, %s160
      %p169 = scmp.eq.s32.totalorder %s25, 0
      %p170 = por %p168, %p169
      %p171 = scmp.ne.s32.totalorder %s159, %s160
      %p172 = scmp.eq.s32.totalorder %s26, 3
      %p173 = por %p171, %p172
      %p175 = scmp.ne.s32.totalorder %s160, %s174
      %p176 = scmp.eq.s32.totalorder %s26, 0
      %p177 = por %p175, %p176
      %s179 = sadd.s32 %s178, 1
      %p182 = scmp.eq.s32.totalorder %s20, 3
      %p183 = scmp.ne.s32.totalorder %s178, %s180
      %p184 = scmp.eq.s32.totalorder %s20, 0
      %p185 = por %p183, %p184
      %p186 = scmp.ne.s32.totalorder %s178, %s180
      %p187 = scmp.eq.s32.totalorder %s25, 3
      %p188 = por %p186, %p187
      %p189 = scmp.ne.s32.totalorder %s180, %s181
      %p190 = scmp.eq.s32.totalorder %s25, 0
      %p191 = por %p189, %p190
      %p192 = scmp.ne.s32.totalorder %s180, %s181
      %p193 = scmp.eq.s32.totalorder %s26, 3
      %p194 = por %p192, %p193
      %p196 = scmp.ne.s32.totalorder %s181, %s195
      %p197 = scmp.eq.s32.totalorder %s26, 0
      %p198 = por %p196, %p197
      %s200 = sadd.s32 %s199, 1
      %p203 = scmp.eq.s32.totalorder %s20, 3
      %p204 = scmp.ne.s32.totalorder %s199, %s201
      %p205 = scmp.eq.s32.totalorder %s20, 0
      %p206 = por %p204, %p205
      %p207 = scmp.ne.s32.totalorder %s199, %s201
      %p208 = scmp.eq.s32.totalorder %s25, 3
      %p209 = por %p207, %p208
      %p210 = scmp.ne.s32.totalorder %s201, %s202
      %p211 = scmp.eq.s32.totalorder %s25, 0
      %p212 = por %p210, %p211
      %p213 = scmp.ne.s32.totalorder %s201, %s202
      %p214 = scmp.eq.s32.totalorder %s26, 3
      %p215 = por %p213, %p214
      %p217 = scmp.ne.s32.totalorder %s202, %s216
      %p218 = scmp.eq.s32.totalorder %s26, 0
      %p219 = por %p217, %p218
      %s220 = ssub.s32 %s27, %s39
      %s221 = ssub.s32 %s28, %s35
      %s222 = sor.u32 %s220, %s221
      %p223 = scmp.eq.s32.totalorder %s222, 0
      %s225 = sadd.s32 %s224, 1
      %s226 = scalar_select %p223, %s224, %s225
      %p229 = pneg %p223
      %p230 = scmp.eq.s32.totalorder %s20, 3
      %p231 = por %p229, %p230
      %p232 = scmp.ne.s32.totalorder %s224, %s227
      %p233 = scmp.eq.s32.totalorder %s20, 0
      %p234 = por %p232, %p233
      %p235 = scmp.ne.s32.totalorder %s224, %s227
      %p236 = scmp.eq.s32.totalorder %s25, 3
      %p237 = por %p235, %p236
      %p238 = scmp.ne.s32.totalorder %s227, %s228
      %p239 = scmp.eq.s32.totalorder %s25, 0
      %p240 = por %p238, %p239
      %p241 = scmp.ne.s32.totalorder %s227, %s228
      %p242 = scmp.eq.s32.totalorder %s26, 3
      %p243 = por %p241, %p242
      %p245 = scmp.ne.s32.totalorder %s228, %s244
      %p246 = scmp.eq.s32.totalorder %s26, 0
      %p247 = por %p245, %p246
      %p248 = scmp.le.s32.totalorder 1, %s20
      %p249 = scmp.lt.s32.totalorder %s20, 5
      %p250 = pnand %p248, %p249
      %p251 = pneg %p250
      // Predicated region
      $region9: #{tpu_custom_call.1} parent=5 // pred_check
        _
      $region10: #{tpu_custom_call.1} parent=5 // pred_check_branch
        %253 = sbr.rel (%p250) target = $region12
      $region11: #{tpu_custom_call.1} parent=5 // pred_region
        %s254 = ssub.s32 %s20, 1
        // Predicated region
        $region13: #{tpu_custom_call.1} parent=11 // pred_check
          %p255 = pneg %p107
        $region14: #{tpu_custom_call.1} parent=11 // pred_check_branch
          %257 = sbr.rel (%p255) target = $region16
        $region15: #{tpu_custom_call.1} parent=11 // pred_region
          _
        $region16: #{tpu_custom_call.1} parent=11 // pred_fallthru
          _
        // Predicated region
        $region17: #{tpu_custom_call.1} parent=11 // pred_check
          %p258 = pneg %p128
        $region18: #{tpu_custom_call.1} parent=11 // pred_check_branch
          %260 = sbr.rel (%p258) target = $region20
        $region19: #{tpu_custom_call.1} parent=11 // pred_region
          _
        $region20: #{tpu_custom_call.1} parent=11 // pred_fallthru
          _
        // Predicated region
        $region21: #{tpu_custom_call.1} parent=11 // pred_check
          %p261 = pneg %p149
        $region22: #{tpu_custom_call.1} parent=11 // pred_check_branch
          %263 = sbr.rel (%p261) target = $region24
        $region23: #{tpu_custom_call.1} parent=11 // pred_region
          _
        $region24: #{tpu_custom_call.1} parent=11 // pred_fallthru
          _
        // Predicated region
        $region25: #{tpu_custom_call.1} parent=11 // pred_check
          %p264 = pneg %p170
        $region26: #{tpu_custom_call.1} parent=11 // pred_check_branch
          %266 = sbr.rel (%p264) target = $region28
        $region27: #{tpu_custom_call.1} parent=11 // pred_region
          _
        $region28: #{tpu_custom_call.1} parent=11 // pred_fallthru
          _
        // Predicated region
        $region29: #{tpu_custom_call.1} parent=11 // pred_check
          %p267 = pneg %p191
        $region30: #{tpu_custom_call.1} parent=11 // pred_check_branch
          %269 = sbr.rel (%p267) target = $region32
        $region31: #{tpu_custom_call.1} parent=11 // pred_region
          _
        $region32: #{tpu_custom_call.1} parent=11 // pred_fallthru
          _
        // Predicated region
        $region33: #{tpu_custom_call.1} parent=11 // pred_check
          %p270 = pneg %p212
        $region34: #{tpu_custom_call.1} parent=11 // pred_check_branch
          %272 = sbr.rel (%p270) target = $region36
        $region35: #{tpu_custom_call.1} parent=11 // pred_region
          _
        $region36: #{tpu_custom_call.1} parent=11 // pred_fallthru
          _
      $region12: #{tpu_custom_call.1} parent=5 // pred_fallthru
        _
      %p273 = scmp.lt.s32.totalorder %s20, 4
      // Predicated region
      $region37: #{tpu_custom_call.1} parent=5 // pred_check
        %p274 = pneg %p273
      $region38: #{tpu_custom_call.1} parent=5 // pred_check_branch
        %276 = sbr.rel (%p274) target = $region40
      $region39: #{tpu_custom_call.1} parent=5 // pred_region
        // Predicated region
        $region41: #{tpu_custom_call.1} parent=39 // pred_check
          %p277 = pneg %p54
        $region42: #{tpu_custom_call.1} parent=39 // pred_check_branch
          %279 = sbr.rel (%p277) target = $region44
        $region43: #{tpu_custom_call.1} parent=39 // pred_region
          %s280 = sand.u32 %s44, 1
          %s281 = scalar_lea.sflag [#allocation3], %s280
          %s282 = sand.u32 %s44, 1
          %s283 = smul.addr %s282, 12
          %s284 = scalar_lea.vmem [#allocation2], %s283
          %s286 = ssub.s32 192, 192
          %287 = vsyncadd %s281, %s286
          %s288 = smul.addr %s28, 3
          %s289 = smul.addr %s27, 6
          %s290 = sadd.s32 %s288, %s289
          %s291 = smul.addr %s290, 64
          %s292 = scalar_lea.hbm %s0, %s291
          %s294 = sshll.u32 %s284, 4
          %s295 = int_to_ptr.vmem [resolvable:$true] %s294
          %297 = dma.hbm_to_vmem [thread:$0]  %s292, 192, %s295, %s281
        $region44: #{tpu_custom_call.1} parent=39 // pred_fallthru
          _
        // Predicated region
        $region45: #{tpu_custom_call.1} parent=39 // pred_check
          %p298 = pneg %p80
        $region46: #{tpu_custom_call.1} parent=39 // pred_check_branch
          %300 = sbr.rel (%p298) target = $region48
        $region47: #{tpu_custom_call.1} parent=39 // pred_region
          %p301 = scmp.lt.s32.totalorder %s28, 1
          %s302 = scalar_select %p301, %s28, 1
          %s303 = smul.addr %s302, 2
          %s304 = scalar_lea.vmem %s1, %s303
        $region48: #{tpu_custom_call.1} parent=39 // pred_fallthru
          _
      $region40: #{tpu_custom_call.1} parent=5 // pred_fallthru
        _
      %p305 = scmp.le.s32.totalorder 1, %s20
      %p306 = scmp.lt.s32.totalorder %s20, 5
      %p307 = pnand %p305, %p306
      %p308 = pneg %p307
      // Predicated region
      $region49: #{tpu_custom_call.1} parent=5 // pred_check
        _
      $region50: #{tpu_custom_call.1} parent=5 // pred_check_branch
        %310 = sbr.rel (%p307) target = $region52
      $region51: #{tpu_custom_call.1} parent=5 // pred_region
        %s311 = ssub.s32 %s20, 1
        %s312 = sand.u32 %s47, 1
        %s313 = scalar_lea.sflag [#allocation3], %s312
        %s314 = sand.u32 %s47, 1
        %s315 = smul.addr %s314, 12
        %s316 = scalar_lea.vmem [#allocation2], %s315
        // Predicated region
        $region53: #{tpu_custom_call.1} parent=51 // pred_check
          %p317 = pneg %p60
        $region54: #{tpu_custom_call.1} parent=51 // pred_check_branch
          %319 = sbr.rel (%p317) target = $region56
        $region55: #{tpu_custom_call.1} parent=51 // pred_region
          %320 = dma.done %s313, 192
        $region56: #{tpu_custom_call.1} parent=51 // pred_fallthru
          _
        %s321 = sand.u32 %s47, 1
        %s322 = scalar_lea.sflag [#allocation3], %s321
        %s323 = sand.u32 %s47, 1
        %s324 = smul.addr %s323, 12
        %s325 = scalar_lea.vmem [#allocation2], %s324
        %p326 = pneg %p60
        %p327 = pneg %p57
        %p328 = scmp.lt.s32.totalorder %s30, 1
        %s329 = scalar_select %p328, %s30, 1
        %s330 = smul.addr %s329, 2
        %s331 = scalar_lea.vmem %s1, %s330
        %p332 = pneg %p86
        %p333 = pneg %p83
        %p334 = pneg %p107
        %p335 = pneg %p104
        %p336 = pneg %p128
        %p337 = pneg %p125
        %p338 = pneg %p149
        %p339 = pneg %p146
        %p340 = pneg %p170
        %p341 = pneg %p167
        %p342 = pneg %p191
        %p343 = pneg %p188
        %p344 = pneg %p212
        %p345 = pneg %p209
        %p346 = pneg %p240
        %p347 = pneg %p237
        %s348 = sand.u32 %s227, 1
        %s349 = scalar_lea.sflag [#allocation4], %s348
        %s350 = sand.u32 %s227, 1
        %s351 = smul.addr %s350, 8
        %s352 = scalar_lea.vmem [#allocation5], %s351
        %p353 = scmp.lt.s32.totalorder %s30, 1
        %s354 = scalar_select %p353, %s30, 1
        %s355 = smul.addr %s354, 2
        %s356 = scalar_lea.vmem %s1, %s355
        %v358 = vld [vmem:[%s316] sm:$0xff]
        %v359 = vld [vmem:[%s316 + $0x8] sm:$0xf]
        %v360 = vld [vmem:[%s356] sm:$0x3]
        %v362 = vcombine.high %v358, %v358
        %v365 = vcombine.low %v358, %v358
        %v366 = vcombine.low %v359, %v359
        %367 = vrot.lane.b32.xlu0 %v365, 127
        %v368 = vpop.permute.xlu0 %367
        %369 = vrot.lane.b32.xlu0 %v358, 127
        %v370 = vpop.permute.xlu0 %369
        %371 = vrot.lane.b32.xlu0 %v366, 127
        %v372 = vpop.permute.xlu0 %371
        %vm373 = vcmask 1039360
        %v374 = vsel %vm373, %v368, %v370
        %v375 = vsel %vm373, %v370, %v372
        %378 = vrot.lane.b32.xlu0 %v358, 126
        %v379 = vpop.permute.xlu0 %378
        %380 = vrot.lane.b32.xlu0 %v362, 126
        %v381 = vpop.permute.xlu0 %380
        %382 = vrot.lane.b32.xlu0 %v359, 126
        %v383 = vpop.permute.xlu0 %382
        %vm384 = vcmask 1031168
        %v385 = vsel %vm384, %v379, %v381
        %v386 = vsel %vm384, %v381, %v383
        %389 = vrot.lane.b32.xlu0 %v365, 110
        %v390 = vpop.permute.xlu0 %389
        %391 = vrot.lane.b32.xlu0 %v358, 110
        %v392 = vpop.permute.xlu0 %391
        %393 = vrot.lane.b32.xlu0 %v366, 110
        %v394 = vpop.permute.xlu0 %393
        %vm395 = vcmask 900096
        %v396 = vsel %vm395, %v390, %v392
        %v397 = vsel %vm395, %v392, %v394
        %400 = vrot.lane.b32.xlu0 %v358, 109
        %v401 = vpop.permute.xlu0 %400
        %402 = vrot.lane.b32.xlu0 %v362, 109
        %v403 = vpop.permute.xlu0 %402
        %404 = vrot.lane.b32.xlu0 %v359, 109
        %v405 = vpop.permute.xlu0 %404
        %vm406 = vcmask 891904
        %v407 = vsel %vm406, %v401, %v403
        %v408 = vsel %vm406, %v403, %v405
        %411 = vrot.lane.b32.xlu0 %v365, 108
        %v412 = vpop.permute.xlu0 %411
        %413 = vrot.lane.b32.xlu0 %v358, 108
        %v414 = vpop.permute.xlu0 %413
        %415 = vrot.lane.b32.xlu0 %v366, 108
        %v416 = vpop.permute.xlu0 %415
        %vm417 = vcmask 883712
        %v418 = vsel %vm417, %v412, %v414
        %v419 = vsel %vm417, %v414, %v416
        %422 = vrot.lane.b32.xlu0 %v358, 92
        %v423 = vpop.permute.xlu0 %422
        %424 = vrot.lane.b32.xlu0 %v362, 92
        %v425 = vpop.permute.xlu0 %424
        %426 = vrot.lane.b32.xlu0 %v359, 92
        %v427 = vpop.permute.xlu0 %426
        %vm428 = vcmask 752640
        %v429 = vsel %vm428, %v423, %v425
        %v430 = vsel %vm428, %v425, %v427
        %433 = vrot.lane.b32.xlu0 %v365, 91
        %v434 = vpop.permute.xlu0 %433
        %435 = vrot.lane.b32.xlu0 %v358, 91
        %v436 = vpop.permute.xlu0 %435
        %437 = vrot.lane.b32.xlu0 %v366, 91
        %v438 = vpop.permute.xlu0 %437
        %vm439 = vcmask 744448
        %v440 = vsel %vm439, %v434, %v436
        %v441 = vsel %vm439, %v436, %v438
        %444 = vrot.lane.b32.xlu0 %v358, 90
        %v445 = vpop.permute.xlu0 %444
        %446 = vrot.lane.b32.xlu0 %v362, 90
        %v447 = vpop.permute.xlu0 %446
        %448 = vrot.lane.b32.xlu0 %v359, 90
        %v449 = vpop.permute.xlu0 %448
        %vm450 = vcmask 736256
        %v451 = vsel %vm450, %v445, %v447
        %v452 = vsel %vm450, %v447, %v449
        %vm455 = vcmask 1043456
        %v456 = vsel %vm455, %v358, %v374
        %v457 = vsel %vm455, %v362, %v375
        %v458 = vsel %vm455, %v385, %v396
        %v459 = vsel %vm455, %v386, %v397
        %v460 = vsel %vm455, %v407, %v418
        %v461 = vsel %vm455, %v408, %v419
        %v462 = vsel %vm455, %v429, %v440
        %v463 = vsel %vm455, %v430, %v441
        %v464 = vpack.c.bf16 %v458, %v456
        %v465 = vpack.c.bf16 %v459, %v457
        %v466 = vpack.c.bf16 %v462, %v460
        %v467 = vpack.c.bf16 %v463, %v461
        %v468 = vpack.c.bf16 %v451, %v451
        %v469 = vpack.c.bf16 %v452, %v452
        %v470 = vld [vmem:[%s2] sm:$0x3]
        %v471 = vld [vmem:[%s3] sm:$0xf]
        %473 = vset.pattern.permute.xlu0 0
        %474 = vperm.xlu0 %473, %v471
        %v475 = vpop.permute.xlu0 %474
        %vm477 = vcmask 293888
        %v479 = vsel %vm477, %v470, 0
        %vm481 = vcmask 1041408
        %v483 = vsel %vm481, %v468, 0
        %v486 = vsel %vm481, %v469, 0
        %488 = vmatprep.subr.bf16.mxu0 %v465
        %489 = vmatpush1.bf16.msra.mxu0 %v464
        %490 = vmatprep.subr.bf16.mxu0 %v467
        %491 = vmatpush1.bf16.msra.mxu0 %v466
        %492 = vmatprep.subr.bf16.mxu0 %v486
        %493 = vmatpush1.bf16.msra.mxu0 %v483
        %494 = vmatprep.subr.bf16.mxu0 0
        %495 = vmatpush1.bf16.msra.mxu0 0
        %496 = vmatprep.subr.bf16.mxu0 0
        %497 = vmatpush1.bf16.msra.mxu0 0
        %498 = vmatprep.subr.bf16.mxu0 0
        %499 = vmatpush1.bf16.msra.mxu0 0
        %500 = vmatprep.subr.bf16.mxu0 0
        %501 = vmatpush1.bf16.msra.mxu0 0
        %502 = vmatprep.subr.bf16.mxu0 0
        %503 = vmatpush1.bf16.msra.mxu0 0
        %504 = vmatprep.subr.bf16.mxu0 0
        %505 = vmatpush1.bf16.msra.mxu0 0
        %506 = vmatprep.subr.bf16.mxu0 0
        %507 = vmatpush1.bf16.msra.mxu0 0
        %508 = vmatprep.subr.bf16.mxu0 0
        %509 = vmatpush1.bf16.msra.mxu0 0
        %510 = vmatprep.subr.bf16.mxu0 0
        %511 = vmatpush1.bf16.msra.mxu0 0
        %512 = vmatprep.subr.bf16.mxu0 0
        %513 = vmatpush1.bf16.msra.mxu0 0
        %514 = vmatprep.subr.bf16.mxu0 0
        %515 = vmatpush1.bf16.msra.mxu0 0
        %516 = vmatprep.subr.bf16.mxu0 0
        %517 = vmatpush1.bf16.msra.mxu0 0
        %518 = vmatprep.subr.bf16.mxu0 0
        %519 = vmatpush1.bf16.msra.mxu0 0
        %520 = vmatprep.mubr.bf16.mxu0 0
        %521 = vmatmul.mubr.bf16.gmra.mrb[0].mxu0 %v479
        %v522 = vpop.f32.mrb[0].mxu0
        %v523 = vadd.f32 %v475, %v522
        %v524 = vpop.f32.mrb[0].mxu0
        %v525 = vadd.f32 %v475, %v524
        %v526 = vpop.f32.mrb[0].mxu0
        %v527 = vpop.f32.mrb[0].mxu0
        %528 = vdwg.mxu0
        %v529 = vmax.f32 %v523, 0.0
        %v530 = vmax.f32 %v525, 0.0
        %v532 = vlaneseq
        %v533 = vshrl.u32 %v532, 7
        %v534 = vsub.s32 0, %v533
        %v535 = vrot.slane %v360, %v534
        %v536 = vlaneseq
        %v537 = vshrl.u32 %v536, 7
        %v538 = vsub.s32 1, %v537
        %v539 = vrot.slane %v360, %v538
        %v542 = vmul.f32 %v529, %v535
        %v543 = vmul.f32 %v530, %v539
        %546 = vrot.lane.b32.xlu0 %v542, 19
        %v547 = vpop.permute.xlu0 %546
        %548 = vrot.lane.b32.xlu0 %v543, 19
        %v549 = vpop.permute.xlu0 %548
        %vm550 = vcmask 154624
        %v551 = vsel %vm550, %v547, %v549
        %v555 = vsel %vm550, 0.0, %v547
        %v556 = vsel %vm550, %v549, 0.0
        %v559 = vrot.slane %v555, 4
        %v560 = vrot.slane %v551, 4
        %v561 = vrot.slane %v556, 4
        %562 = vrot.lane.b32.xlu0 %v559, 127
        %v563 = vpop.permute.xlu0 %562
        %564 = vrot.lane.b32.xlu0 %v560, 127
        %v565 = vpop.permute.xlu0 %564
        %566 = vrot.lane.b32.xlu0 %v561, 127
        %v567 = vpop.permute.xlu0 %566
        %v568 = vsel %vm373, %v563, %v565
        %v569 = vsel %vm373, %v565, %v567
        %572 = vrot.lane.b32.xlu0 %v555, 126
        %v573 = vpop.permute.xlu0 %572
        %574 = vrot.lane.b32.xlu0 %v551, 126
        %v575 = vpop.permute.xlu0 %574
        %576 = vrot.lane.b32.xlu0 %v556, 126
        %v577 = vpop.permute.xlu0 %576
        %v578 = vsel %vm384, %v573, %v575
        %v579 = vsel %vm384, %v575, %v577
        %582 = vrot.lane.b32.xlu0 %v559, 110
        %v583 = vpop.permute.xlu0 %582
        %584 = vrot.lane.b32.xlu0 %v560, 110
        %v585 = vpop.permute.xlu0 %584
        %586 = vrot.lane.b32.xlu0 %v561, 110
        %v587 = vpop.permute.xlu0 %586
        %v588 = vsel %vm395, %v583, %v585
        %v589 = vsel %vm395, %v585, %v587
        %592 = vrot.lane.b32.xlu0 %v555, 109
        %v593 = vpop.permute.xlu0 %592
        %594 = vrot.lane.b32.xlu0 %v551, 109
        %v595 = vpop.permute.xlu0 %594
        %596 = vrot.lane.b32.xlu0 %v556, 109
        %v597 = vpop.permute.xlu0 %596
        %v598 = vsel %vm406, %v593, %v595
        %v599 = vsel %vm406, %v595, %v597
        %602 = vrot.lane.b32.xlu0 %v559, 108
        %v603 = vpop.permute.xlu0 %602
        %604 = vrot.lane.b32.xlu0 %v560, 108
        %v605 = vpop.permute.xlu0 %604
        %606 = vrot.lane.b32.xlu0 %v561, 108
        %v607 = vpop.permute.xlu0 %606
        %v608 = vsel %vm417, %v603, %v605
        %v609 = vsel %vm417, %v605, %v607
        %612 = vrot.lane.b32.xlu0 %v555, 92
        %v613 = vpop.permute.xlu0 %612
        %614 = vrot.lane.b32.xlu0 %v551, 92
        %v615 = vpop.permute.xlu0 %614
        %616 = vrot.lane.b32.xlu0 %v556, 92
        %v617 = vpop.permute.xlu0 %616
        %v618 = vsel %vm428, %v613, %v615
        %v619 = vsel %vm428, %v615, %v617
        %622 = vrot.lane.b32.xlu0 %v559, 91
        %v623 = vpop.permute.xlu0 %622
        %624 = vrot.lane.b32.xlu0 %v560, 91
        %v625 = vpop.permute.xlu0 %624
        %626 = vrot.lane.b32.xlu0 %v561, 91
        %v627 = vpop.permute.xlu0 %626
        %v628 = vsel %vm439, %v623, %v625
        %v629 = vsel %vm439, %v625, %v627
        %632 = vrot.lane.b32.xlu0 %v555, 90
        %v633 = vpop.permute.xlu0 %632
        %634 = vrot.lane.b32.xlu0 %v551, 90
        %v635 = vpop.permute.xlu0 %634
        %636 = vrot.lane.b32.xlu0 %v556, 90
        %v637 = vpop.permute.xlu0 %636
        %v638 = vsel %vm450, %v633, %v635
        %v639 = vsel %vm450, %v635, %v637
        %v642 = vsel %vm455, %v555, %v568
        %v643 = vsel %vm455, %v551, %v569
        %v644 = vsel %vm455, %v578, %v588
        %v645 = vsel %vm455, %v579, %v589
        %v646 = vsel %vm455, %v598, %v608
        %v647 = vsel %vm455, %v599, %v609
        %v648 = vsel %vm455, %v618, %v628
        %v649 = vsel %vm455, %v619, %v629
        %v650 = vpack.c.bf16 %v644, %v642
        %v651 = vpack.c.bf16 %v645, %v643
        %v652 = vpack.c.bf16 %v648, %v646
        %v653 = vpack.c.bf16 %v649, %v647
        %v654 = vpack.c.bf16 %v638, %v638
        %v655 = vpack.c.bf16 %v639, %v639
        %v656 = vld [vmem:[%s4] sm:$0x3]
        %v657 = vld [vmem:[%s5] sm:$0xf]
        %659 = vset.pattern.permute.xlu0 0
        %660 = vperm.xlu0 %659, %v657
        %v661 = vpop.permute.xlu0 %660
        %v664 = vsel %vm477, %v656, 0
        %v667 = vsel %vm481, %v654, 0
        %v670 = vsel %vm481, %v655, 0
        %672 = vmatprep.subr.bf16.mxu0 %v651
        %673 = vmatpush1.bf16.msra.mxu0 %v650
        %674 = vmatprep.subr.bf16.mxu0 %v653
        %675 = vmatpush1.bf16.msra.mxu0 %v652
        %676 = vmatprep.subr.bf16.mxu0 %v670
        %677 = vmatpush1.bf16.msra.mxu0 %v667
        %678 = vmatprep.subr.bf16.mxu0 0
        %679 = vmatpush1.bf16.msra.mxu0 0
        %680 = vmatprep.subr.bf16.mxu0 0
        %681 = vmatpush1.bf16.msra.mxu0 0
        %682 = vmatprep.subr.bf16.mxu0 0
        %683 = vmatpush1.bf16.msra.mxu0 0
        %684 = vmatprep.subr.bf16.mxu0 0
        %685 = vmatpush1.bf16.msra.mxu0 0
        %686 = vmatprep.subr.bf16.mxu0 0
        %687 = vmatpush1.bf16.msra.mxu0 0
        %688 = vmatprep.subr.bf16.mxu0 0
        %689 = vmatpush1.bf16.msra.mxu0 0
        %690 = vmatprep.subr.bf16.mxu0 0
        %691 = vmatpush1.bf16.msra.mxu0 0
        %692 = vmatprep.subr.bf16.mxu0 0
        %693 = vmatpush1.bf16.msra.mxu0 0
        %694 = vmatprep.subr.bf16.mxu0 0
        %695 = vmatpush1.bf16.msra.mxu0 0
        %696 = vmatprep.subr.bf16.mxu0 0
        %697 = vmatpush1.bf16.msra.mxu0 0
        %698 = vmatprep.subr.bf16.mxu0 0
        %699 = vmatpush1.bf16.msra.mxu0 0
        %700 = vmatprep.subr.bf16.mxu0 0
        %701 = vmatpush1.bf16.msra.mxu0 0
        %702 = vmatprep.subr.bf16.mxu0 0
        %703 = vmatpush1.bf16.msra.mxu0 0
        %704 = vmatprep.mubr.bf16.mxu0 0
        %705 = vmatmul.mubr.bf16.gmra.mrb[0].mxu0 %v664
        %v706 = vpop.f32.mrb[0].mxu0
        %v707 = vadd.f32 %v661, %v706
        %v708 = vpop.f32.mrb[0].mxu0
        %v709 = vadd.f32 %v661, %v708
        %v710 = vpop.f32.mrb[0].mxu0
        %v711 = vpop.f32.mrb[0].mxu0
        %712 = vdwg.mxu0
        %v713 = vmax.f32 %v707, 0.0
        %v714 = vmax.f32 %v709, 0.0
        %v715 = vld [vmem:[%s6] sm:$0x3]
        %v716 = vpack.c.bf16 %v713, %v713
        %v717 = vpack.c.bf16 %v714, %v714
        %v718 = vld [vmem:[%s7] sm:$0xf]
        %720 = vset.pattern.permute.xlu0 0
        %721 = vperm.xlu0 %720, %v718
        %v722 = vpop.permute.xlu0 %721
        %vm724 = vcmask 31744
        %v726 = vsel %vm724, %v715, 0
        %v729 = vsel %vm481, %v716, 0
        %v732 = vsel %vm481, %v717, 0
        %734 = vmatprep.subr.bf16.mxu0 %v732
        %735 = vmatpush1.bf16.msra.mxu0 %v729
        %736 = vmatprep.subr.bf16.mxu0 0
        %737 = vmatpush1.bf16.msra.mxu0 0
        %738 = vmatprep.subr.bf16.mxu0 0
        %739 = vmatpush1.bf16.msra.mxu0 0
        %740 = vmatprep.subr.bf16.mxu0 0
        %741 = vmatpush1.bf16.msra.mxu0 0
        %742 = vmatprep.subr.bf16.mxu0 0
        %743 = vmatpush1.bf16.msra.mxu0 0
        %744 = vmatprep.subr.bf16.mxu0 0
        %745 = vmatpush1.bf16.msra.mxu0 0
        %746 = vmatprep.subr.bf16.mxu0 0
        %747 = vmatpush1.bf16.msra.mxu0 0
        %748 = vmatprep.subr.bf16.mxu0 0
        %749 = vmatpush1.bf16.msra.mxu0 0
        %750 = vmatprep.subr.bf16.mxu0 0
        %751 = vmatpush1.bf16.msra.mxu0 0
        %752 = vmatprep.subr.bf16.mxu0 0
        %753 = vmatpush1.bf16.msra.mxu0 0
        %754 = vmatprep.subr.bf16.mxu0 0
        %755 = vmatpush1.bf16.msra.mxu0 0
        %756 = vmatprep.subr.bf16.mxu0 0
        %757 = vmatpush1.bf16.msra.mxu0 0
        %758 = vmatprep.subr.bf16.mxu0 0
        %759 = vmatpush1.bf16.msra.mxu0 0
        %760 = vmatprep.subr.bf16.mxu0 0
        %761 = vmatpush1.bf16.msra.mxu0 0
        %762 = vmatprep.subr.bf16.mxu0 0
        %763 = vmatpush1.bf16.msra.mxu0 0
        %764 = vmatprep.subr.bf16.mxu0 0
        %765 = vmatpush1.bf16.msra.mxu0 0
        %766 = vmatprep.mubr.bf16.mxu0 0
        %767 = vmatmul.mubr.bf16.gmra.mrb[0].mxu0 %v726
        %v768 = vpop.f32.mrb[0].mxu0
        %v769 = vadd.f32 %v722, %v768
        %v770 = vpop.f32.mrb[0].mxu0
        %v771 = vadd.f32 %v722, %v770
        %v772 = vpop.f32.mrb[0].mxu0
        %v773 = vpop.f32.mrb[0].mxu0
        %774 = vdwg.mxu0
        %v775 = vadd.f32 %v769, %v407
        %v776 = vadd.f32 %v771, %v408
        %v777 = vmax.f32 %v775, 0.0
        %v778 = vmax.f32 %v776, 0.0
        %v781 = vcombine.low %v777, %v778
        %783 = vst [vmem:[%s352] sm:$0xff] %v781
        %s784 = sand.u32 %s227, 1
        %s785 = scalar_lea.sflag [#allocation4], %s784
        %s786 = sand.u32 %s227, 1
        %s787 = smul.addr %s786, 8
        %s788 = scalar_lea.vmem [#allocation5], %s787
        // Predicated region
        $region57: #{tpu_custom_call.1} parent=51 // pred_check
          %p789 = pneg %p237
        $region58: #{tpu_custom_call.1} parent=51 // pred_check_branch
          %791 = sbr.rel (%p789) target = $region60
        $region59: #{tpu_custom_call.1} parent=51 // pred_region
          %s793 = ssub.s32 128, 128
          %794 = vsyncadd %s785, %s793
          %s795 = smul.addr %s30, 2
          %s796 = smul.addr %s29, 4
          %s797 = sadd.s32 %s795, %s796
          %s798 = smul.addr %s797, 64
          %s799 = scalar_lea.hbm %s8, %s798
          %s801 = sshll.u32 %s788, 4
          %s802 = int_to_ptr.vmem [resolvable:$true] %s801
          %804 = dma.vmem_to_hbm [thread:$0]  %s802, 128, %s799, %s785
        $region60: #{tpu_custom_call.1} parent=51 // pred_fallthru
          _
      $region52: #{tpu_custom_call.1} parent=5 // pred_fallthru
        _
      %p805 = scmp.le.s32.totalorder 2, %s20
      // Predicated region
      $region61: #{tpu_custom_call.1} parent=5 // pred_check
        %p806 = pneg %p805
      $region62: #{tpu_custom_call.1} parent=5 // pred_check_branch
        %808 = sbr.rel (%p806) target = $region64
      $region63: #{tpu_custom_call.1} parent=5 // pred_region
        %s809 = ssub.s32 %s20, 2
        // Predicated region
        $region65: #{tpu_custom_call.1} parent=63 // pred_check
          %p810 = pneg %p243
        $region66: #{tpu_custom_call.1} parent=63 // pred_check_branch
          %812 = sbr.rel (%p810) target = $region68
        $region67: #{tpu_custom_call.1} parent=63 // pred_region
          %s813 = sand.u32 %s228, 1
          %s814 = scalar_lea.sflag [#allocation4], %s813
          %s815 = sand.u32 %s228, 1
          %s816 = smul.addr %s815, 8
          %s817 = scalar_lea.vmem [#allocation5], %s816
          %818 = dma.done %s814, 128
        $region68: #{tpu_custom_call.1} parent=63 // pred_fallthru
          _
      $region64: #{tpu_custom_call.1} parent=5 // pred_fallthru
        _
    $region6: #{tpu_custom_call.1} parent=1 // loop_footer
      %s24 = sadd.s32 1, %s20
    $region7: #{tpu_custom_call.1} parent=1 // loop_footer_branch
      %19 = sbr.rel target = $region3
    $region8: #{tpu_custom_call.1} parent=1 // loop_exit
      _
    %819 = vsyncpa [#allocation3], 1
    %s820 = scalar_lea.sflag [#allocation3], 1
    %821 = vsyncpa %s820, 1
    %822 = vsyncpa [#allocation4], 1
    %s823 = scalar_lea.sflag [#allocation4], 1
    %824 = vsyncpa %s823, 1

</llo_original>
